<compile_context>
chip_gen: v7x
topology: tpu7x:2x2x1
jax: 0.10.0
libtpu: 0.0.40
codegen_flags: <defaults>
</compile_context>

<pallas_src>
import functools
import math

import jax
import jax.numpy as jnp
from jax.experimental import pallas as pl
from jax.experimental.pallas import tpu as pltpu


def _head_kernel(x_ref, w_ref, b_ref, o_ref):
    """Fused AdaptiveAvgPool2d(1) + flatten + Linear for one batch tile.

    x_ref: [TB, HW, C]   backbone feature tile (NHWC, spatial flattened), bf16/f32
    w_ref: [C, out_dim]  fc weight, pre-transposed and pre-scaled by 1/HW, f32
    b_ref: [1, out_dim]  fc bias, f32
    o_ref: [TB, out_dim] f32
    """
    # Accumulate the spatial sum in f32 (v5e's VPU has no bf16; f32 also avoids
    # bf16 accumulation error over HW terms). The 1/HW mean scale is folded
    # into w_ref, so this is a plain sum, not a mean.
    pooled = jnp.sum(x_ref[...].astype(jnp.float32), axis=1)          # [TB, C]
    y = jnp.dot(pooled, w_ref[...], preferred_element_type=jnp.float32)
    # TODO(synk): out_dim=32 forces lane-sparse (masked) stores; pad/pack heads
    # to a multiple of 128 output lanes if the surrounding model allows it.
    o_ref[...] = y + b_ref[...]


def prepare_head_params(fc_weight, fc_bias, hw):
    """One-time prep (NOT on the per-forward path): transpose the nn.Linear
    weight to [C, out_dim], fold the 1/(H*W) AdaptiveAvgPool mean scale into
    it, and give the bias a 2-D shape."""
    w_t = (jnp.transpose(fc_weight) / float(hw)).astype(jnp.float32)   # [C, out]
    b2 = fc_bias.reshape(1, -1).astype(jnp.float32)                    # [1, out]
    return w_t, b2


@functools.partial(jax.jit, static_argnames=("batch_tile",))
def content_encoder_head(feat_nhwc, w_t, b2, *, batch_tile=128):
    """feat_nhwc: [B, H, W, C] backbone output (native dtype, e.g. bf16).
    w_t: [C, out_dim] pre-scaled/pre-transposed fc weight; b2: [1, out_dim]."""
    B, H, W, C = feat_nhwc.shape
    out_dim = w_t.shape[1]
    hw = H * W

    # Free dim-merge (no transpose, no copy): [B, H, W, C] -> [B, HW, C].
    x = feat_nhwc.reshape(B, hw, C)

    # Batch tile: whole batch when small; otherwise a multiple of 8 (128 keeps
    # (x tile + out tile) * 2 buffers + W comfortably under v7x's 64 MiB VMEM
    # even at MobileNetV2 scale C=1280 in bf16).
    tb = B if B <= batch_tile else batch_tile
    grid = (pl.cdiv(B, tb),)

    return pl.pallas_call(
        _head_kernel,
        out_shape=jax.ShapeDtypeStruct((B, out_dim), jnp.float32),
        grid=grid,
        in_specs=[
            pl.BlockSpec((tb, hw, C), lambda i: (i, 0, 0)),
            # Grid-invariant blocks: weight/bias stay VMEM-resident across steps.
            pl.BlockSpec((C, out_dim), lambda i: (0, 0)),
            pl.BlockSpec((1, out_dim), lambda i: (0, 0)),
        ],
        out_specs=pl.BlockSpec((tb, out_dim), lambda i: (i, 0)),
        compiler_params=pltpu.CompilerParams(
            # Batch tiles are independent -> shard across both TCs on v7x.
            dimension_semantics=("parallel",),
            vmem_limit_bytes=64 * 1024 * 1024,
        ),
    )(x, w_t, b2)


def init_fc_params(key, out_dim, embd_dim):
    """Deterministic nn.Linear init (uniform +/- 1/sqrt(fan_in)), like PyTorch."""
    kw, kb = jax.random.split(key)
    bound = 1.0 / math.sqrt(embd_dim)
    weight = jax.random.uniform(
        kw, (out_dim, embd_dim), jnp.float32, minval=-bound, maxval=bound
    )
    bias = jax.random.uniform(
        kb, (out_dim,), jnp.float32, minval=-bound, maxval=bound
    )
    return weight, bias


if __name__ == "__main__":
    # arch='resnet8_cifar' -> embd_dim = 64; backbone output is 8x8 spatial.
    B, H, W, EMBD_DIM = 2, 8, 8, 64
    OUT_DIM = 32

    key = jax.random.PRNGKey(0)
    k_feat, k_fc = jax.random.split(key)

    # Synthetic backbone feature map in the backbone's native layout/dtype
    # (NHWC, bf16) -- stands in for self.model(x).
    feats = jax.random.normal(k_feat, (B, H, W, EMBD_DIM), dtype=jnp.float32)
    feats = feats.astype(jnp.bfloat16)
    fc_w, fc_b = init_fc_params(k_fc, OUT_DIM, EMBD_DIM)

    # One-time parameter prep (pre-transpose + fold the 1/HW mean scale).
    w_t, b2 = prepare_head_params(fc_w, fc_b, H * W)

    out = content_encoder_head(feats, w_t, b2)
    out = jax.block_until_ready(out)

    # Pure-JAX reference for the same head (same bf16 features, f32 math).
    pooled_ref = jnp.mean(feats.astype(jnp.float32), axis=(1, 2))
    ref = pooled_ref @ fc_w.T + fc_b

    assert out.shape == (B, OUT_DIM)
    # bf16 inputs / MXU default-precision matmul -> loosened tolerance.
    assert jnp.allclose(out, ref, atol=1e-2, rtol=1e-2), float(
        jnp.max(jnp.abs(out - ref))
    )

    print("KERNEL_OK")
</pallas_src>

<mosaic_0001>
module attributes {stable_mosaic.version = 11 : i64} {
  func.func @_head_kernel(%arg0: i32, %arg1: memref<2x64x64xbf16, #tpu.memory_space<vmem>>, %arg2: memref<64x32xf32, #tpu.memory_space<vmem>>, %arg3: memref<1x32xf32, #tpu.memory_space<vmem>>, %arg4: memref<2x32xf32, #tpu.memory_space<vmem>>) attributes {dimension_semantics = [#tpu.dimension_semantics<parallel>], iteration_bounds = array<i64: 1>, scalar_prefetch = 0 : i64, scratch_operands = 0 : i64, tpu.core_type = #tpu.core_type<tc>, window_params = [{transform_indices = @transform_0, window_bounds = array<i64: 2, 64, 64>}, {pipeline_mode = #tpu.pipeline_mode<synchronous>, transform_indices = @transform_1, window_bounds = array<i64: 64, 32>}, {pipeline_mode = #tpu.pipeline_mode<synchronous>, transform_indices = @transform_2, window_bounds = array<i64: 1, 32>}, {transform_indices = @transform_3, window_bounds = array<i64: 2, 32>}]} {
    %c0 = arith.constant 0 : index
    %c0_0 = arith.constant 0 : index
    %c0_1 = arith.constant 0 : index
    %0 = vector.load %arg1[%c0, %c0_0, %c0_1] : memref<2x64x64xbf16, #tpu.memory_space<vmem>>, vector<2x64x64xbf16>
    %1 = arith.extf %0 : vector<2x64x64xbf16> to vector<2x64x64xf32>
    %cst = arith.constant dense<0.000000e+00> : vector<2x64xf32>
    %2 = vector.multi_reduction <add>, %1, %cst [1] : vector<2x64x64xf32> to vector<2x64xf32>
    %c0_2 = arith.constant 0 : index
    %c0_3 = arith.constant 0 : index
    %3 = vector.load %arg2[%c0_2, %c0_3] : memref<64x32xf32, #tpu.memory_space<vmem>>, vector<64x32xf32>
    %cst_4 = arith.constant dense<0.000000e+00> : vector<2x32xf32>
    %4 = tpu.matmul %2, %3, %cst_4 {dimension_numbers = #tpu.dot_dimension_numbers<[1], [0], [0], [1], [0, 0, 1, 1], [], []>} : vector<2x64xf32>, vector<64x32xf32>, vector<2x32xf32> -> vector<2x32xf32>
    %c0_5 = arith.constant 0 : index
    %c0_6 = arith.constant 0 : index
    %5 = vector.load %arg3[%c0_5, %c0_6] : memref<1x32xf32, #tpu.memory_space<vmem>>, vector<1x32xf32>
    %6 = vector.broadcast %5 : vector<1x32xf32> to vector<2x32xf32>
    %7 = arith.addf %4, %6 : vector<2x32xf32>
    %c0_7 = arith.constant 0 : index
    %c0_8 = arith.constant 0 : index
    %8 = vector.load %arg4[%c0_7, %c0_8] : memref<2x32xf32, #tpu.memory_space<vmem>>, vector<2x32xf32>
    tpu.vector_store %arg4[%c0_7, %c0_8], %7 {strides = array<i32>} : memref<2x32xf32, #tpu.memory_space<vmem>>, vector<2x32xf32>,
    return
  }
  func.func @transform_0(%arg0: i32) -> (i32, i32, i32) {
    %c0_i32 = arith.constant 0 : i32
    %c0_i32_0 = arith.constant 0 : i32
    %c0_i32_1 = arith.constant 0 : i32
    return %arg0, %c0_i32, %c0_i32_0 : i32, i32, i32
  }
  func.func @transform_1(%arg0: i32) -> (i32, i32) {
    %c0_i32 = arith.constant 0 : i32
    %c0_i32_0 = arith.constant 0 : i32
    %c0_i32_1 = arith.constant 0 : i32
    return %c0_i32, %c0_i32_0 : i32, i32
  }
  func.func @transform_2(%arg0: i32) -> (i32, i32) {
    %c0_i32 = arith.constant 0 : i32
    %c0_i32_0 = arith.constant 0 : i32
    %c0_i32_1 = arith.constant 0 : i32
    return %c0_i32, %c0_i32_0 : i32, i32
  }
  func.func @transform_3(%arg0: i32) -> (i32, i32) {
    %c0_i32 = arith.constant 0 : i32
    %c0_i32_0 = arith.constant 0 : i32
    return %arg0, %c0_i32 : i32, i32
  }
}

</mosaic_0001>

<llo_original>
// kernel: content_encoder_head.1
$region0: #{content_encoder_head.1}
  #allocation0 [shape = 'u32[]', space=smem, size = 0x4, offset = 0x4, fixed_abs, tag = 'smem constant byte address 0x4 - core index']
  #allocation1 [shape = 'u32[144,128]{1,0:T(1,128)}', space=vmem, size = 0x12000, scoped, tag = 'internal scratch']
  %s0 = inlined_call_operand.hbm [shape: bf16[2,64,64], index: 0, kind: input, shape index: {}]
  %s1 = inlined_call_operand.hbm [shape: f32[64,32], index: 1, kind: input, shape index: {}]
  %s2 = inlined_call_operand.hbm [shape: f32[1,32], index: 2, kind: input, shape index: {}]
  %s3 = inlined_call_operand.hbm [shape: f32[2,32], index: 3, kind: output, shape index: {}]
  %s4 = sld [smem:[#allocation0]]
  $region34: #{content_encoder_head.1} parent=0
    _
  %s6 = ssub.s32 1, %s4
  %s7 = scalar_select 0, %s6, %s4
  $region1: #{content_encoder_head.1} parent=0
    #allocation2 [shape = 'u8[32768]{0}', space=vmem, size = 0x8000, scoped, tag = 'input window, operand 0, single buffered']
    #allocation3 [shape = 's32[1]{0}', space=sflag, size = 0x4, scoped, tag = 'scoped memory for content_encoder_head.1']
    #allocation4 [shape = 's32[1]{0}', space=sflag, size = 0x4, scoped, tag = 'scoped memory for content_encoder_head.1']
    #allocation5 [shape = 'u8[32768]{0}', space=vmem, size = 0x8000, scoped, tag = 'input window, operand 1, single buffered']
    #allocation6 [shape = 's32[1]{0}', space=sflag, size = 0x4, scoped, tag = 'scoped memory for content_encoder_head.1']
    #allocation7 [shape = 'u8[512]{0}', space=vmem, size = 0x400, scoped, tag = 'input window, operand 2, single buffered']
    #allocation8 [shape = 'u8[1024]{0}', space=vmem, size = 0x400, scoped, tag = 'output window, operand 0, single buffered']
    %8 = vsyncpa [#allocation3], 0
    %9 = vsyncpa [#allocation6], 0
    %10 = vsyncpa [#allocation4], 0
    // Predicated region
    $region2: #{content_encoder_head.1} parent=1 // pred_check
      _
    $region3: #{content_encoder_head.1} parent=1 // pred_check_branch
      %12 = sbr.rel (0) target = $region5
    $region4: #{content_encoder_head.1} parent=1 // pred_region
      %s14 = ssub.s32 1024, 1024
      %15 = vsyncadd [#allocation3], %s14
      %s16 = sshll.u32 [#allocation2], 4
      %s17 = int_to_ptr.vmem [resolvable:$true] %s16
      %22 = dma.hbm_to_vmem [thread:$0]  %s0, 1024, %s17, [#allocation3], 64, 64, 4
    $region5: #{content_encoder_head.1} parent=1 // pred_fallthru
      _
    // Predicated region
    $region6: #{content_encoder_head.1} parent=1 // pred_check
      _
    $region7: #{content_encoder_head.1} parent=1 // pred_check_branch
      %24 = sbr.rel (0) target = $region9
    $region8: #{content_encoder_head.1} parent=1 // pred_region
      %s26 = ssub.s32 1024, 1024
      %27 = vsyncadd [#allocation6], %s26
      %s28 = sshll.u32 [#allocation5], 4
      %s29 = int_to_ptr.vmem [resolvable:$true] %s28
      %34 = dma.hbm_to_vmem [thread:$0]  %s1, 1024, %s29, [#allocation6], 128, 128, 8
    $region9: #{content_encoder_head.1} parent=1 // pred_fallthru
      _
    // Predicated region
    $region10: #{content_encoder_head.1} parent=1 // pred_check
      _
    $region11: #{content_encoder_head.1} parent=1 // pred_check_branch
      %36 = sbr.rel (0) target = $region13
    $region12: #{content_encoder_head.1} parent=1 // pred_region
      %s38 = ssub.s32 16, 16
      %39 = vsyncadd [#allocation6], %s38
      %s41 = sshll.u32 [#allocation7], 4
      %s42 = int_to_ptr.vmem [resolvable:$true] %s41
      %44 = dma.hbm_to_vmem [thread:$0]  %s2, 16, %s42, [#allocation6]
    $region13: #{content_encoder_head.1} parent=1 // pred_fallthru
      _
    // Predicated region
    $region14: #{content_encoder_head.1} parent=1 // pred_check
      _
    $region15: #{content_encoder_head.1} parent=1 // pred_check_branch
      %46 = sbr.rel (0) target = $region17
    $region16: #{content_encoder_head.1} parent=1 // pred_region
      %47 = dma.done [#allocation3], 1024
    $region17: #{content_encoder_head.1} parent=1 // pred_fallthru
      _
    // Predicated region
    $region18: #{content_encoder_head.1} parent=1 // pred_check
      _
    $region19: #{content_encoder_head.1} parent=1 // pred_check_branch
      %49 = sbr.rel (0) target = $region21
    $region20: #{content_encoder_head.1} parent=1 // pred_region
      %50 = dma.done [#allocation6], 1024
    $region21: #{content_encoder_head.1} parent=1 // pred_fallthru
      _
    // Predicated region
    $region22: #{content_encoder_head.1} parent=1 // pred_check
      _
    $region23: #{content_encoder_head.1} parent=1 // pred_check_branch
      %52 = sbr.rel (0) target = $region25
    $region24: #{content_encoder_head.1} parent=1 // pred_region
      %53 = dma.done [#allocation6], 16
    $region25: #{content_encoder_head.1} parent=1 // pred_fallthru
      _
    %v54 = vld [vmem:[#allocation2] sm:$0xf]
    %v55 = vld [vmem:[#allocation2 + $0x4] sm:$0xf]
    %v56 = vld [vmem:[#allocation2 + $0x8] sm:$0xf]
    %v57 = vld [vmem:[#allocation2 + $0xc] sm:$0xf]
    %v58 = vld [vmem:[#allocation2 + $0x10] sm:$0xf]
    %v59 = vld [vmem:[#allocation2 + $0x14] sm:$0xf]
    %v60 = vld [vmem:[#allocation2 + $0x18] sm:$0xf]
    %v61 = vld [vmem:[#allocation2 + $0x1c] sm:$0xf]
    %v62 = vld [vmem:[#allocation2 + $0x20] sm:$0xf]
    %v63 = vld [vmem:[#allocation2 + $0x24] sm:$0xf]
    %v64 = vld [vmem:[#allocation2 + $0x28] sm:$0xf]
    %v65 = vld [vmem:[#allocation2 + $0x2c] sm:$0xf]
    %v66 = vld [vmem:[#allocation2 + $0x30] sm:$0xf]
    %v67 = vld [vmem:[#allocation2 + $0x34] sm:$0xf]
    %v68 = vld [vmem:[#allocation2 + $0x38] sm:$0xf]
    %v69 = vld [vmem:[#allocation2 + $0x3c] sm:$0xf]
    %v70 = vunpack.c.l.bf16 %v54
    %v71 = vunpack.c.l.bf16 %v55
    %v72 = vunpack.c.l.bf16 %v56
    %v73 = vunpack.c.l.bf16 %v57
    %v74 = vunpack.c.l.bf16 %v58
    %v75 = vunpack.c.l.bf16 %v59
    %v76 = vunpack.c.l.bf16 %v60
    %v77 = vunpack.c.l.bf16 %v61
    %v78 = vunpack.c.l.bf16 %v62
    %v79 = vunpack.c.l.bf16 %v63
    %v80 = vunpack.c.l.bf16 %v64
    %v81 = vunpack.c.l.bf16 %v65
    %v82 = vunpack.c.l.bf16 %v66
    %v83 = vunpack.c.l.bf16 %v67
    %v84 = vunpack.c.l.bf16 %v68
    %v85 = vunpack.c.l.bf16 %v69
    %vm86 = vcmask 523264
    %v87 = vsel %vm86, %v70, 0.0
    %v88 = vsel %vm86, %v71, 0.0
    %v89 = vadd.f32 %v87, %v88
    %v90 = vsel %vm86, %v72, 0.0
    %v91 = vadd.f32 %v89, %v90
    %v92 = vsel %vm86, %v73, 0.0
    %v93 = vadd.f32 %v91, %v92
    %v94 = vsel %vm86, %v74, 0.0
    %v95 = vadd.f32 %v93, %v94
    %v96 = vsel %vm86, %v75, 0.0
    %v97 = vadd.f32 %v95, %v96
    %v98 = vsel %vm86, %v76, 0.0
    %v99 = vadd.f32 %v97, %v98
    %v100 = vsel %vm86, %v77, 0.0
    %v101 = vadd.f32 %v99, %v100
    %v102 = vrot.slane %v101, 4
    %v103 = vadd.f32 %v101, %v102
    %v104 = vrot.slane %v103, 2
    %v105 = vadd.f32 %v103, %v104
    %v106 = vrot.slane %v105, 1
    %v107 = vadd.f32 %v105, %v106
    %v108 = vsel %vm86, %v78, 0.0
    %v109 = vsel %vm86, %v79, 0.0
    %v110 = vadd.f32 %v108, %v109
    %v111 = vsel %vm86, %v80, 0.0
    %v112 = vadd.f32 %v110, %v111
    %v113 = vsel %vm86, %v81, 0.0
    %v114 = vadd.f32 %v112, %v113
    %v115 = vsel %vm86, %v82, 0.0
    %v116 = vadd.f32 %v114, %v115
    %v117 = vsel %vm86, %v83, 0.0
    %v118 = vadd.f32 %v116, %v117
    %v119 = vsel %vm86, %v84, 0.0
    %v120 = vadd.f32 %v118, %v119
    %v121 = vsel %vm86, %v85, 0.0
    %v122 = vadd.f32 %v120, %v121
    %v123 = vrot.slane %v122, 4
    %v124 = vadd.f32 %v122, %v123
    %v125 = vrot.slane %v124, 2
    %v126 = vadd.f32 %v124, %v125
    %v127 = vrot.slane %v126, 1
    %v128 = vadd.f32 %v126, %v127
    %v129 = vld [vmem:[#allocation5] sm:$0xff]
    %v130 = vld [vmem:[#allocation5 + $0x8] sm:$0xff]
    %v131 = vld [vmem:[#allocation5 + $0x10] sm:$0xff]
    %v132 = vld [vmem:[#allocation5 + $0x18] sm:$0xff]
    %v133 = vld [vmem:[#allocation5 + $0x20] sm:$0xff]
    %v134 = vld [vmem:[#allocation5 + $0x28] sm:$0xff]
    %v135 = vld [vmem:[#allocation5 + $0x30] sm:$0xff]
    %v136 = vld [vmem:[#allocation5 + $0x38] sm:$0xff]
    %v137 = vld [vmem:[#allocation7] sm:$0x1]
    %v139 = vlaneseq
    %v140 = vshrl.u32 %v139, 7
    %v141 = vsub.s32 0, %v140
    %v142 = vrot.slane %v137, %v141
    %vm146 = vcmask 1041409
    %v147 = vsel %vm146, %v128, %v107
    %v148 = vsel %vm86, %v147, 0
    %150 = vmatprep.subr.mxu0 0.0
    %151 = vmatpush1.msra.mxu0 %v129
    %152 = vmatprep.subr.mxu0 0.0
    %153 = vmatpush1.msra.mxu0 %v130
    %154 = vmatprep.subr.mxu0 0.0
    %155 = vmatpush1.msra.mxu0 %v131
    %156 = vmatprep.subr.mxu0 0.0
    %157 = vmatpush1.msra.mxu0 %v132
    %158 = vmatprep.subr.mxu0 0.0
    %159 = vmatpush1.msra.mxu0 %v133
    %160 = vmatprep.subr.mxu0 0.0
    %161 = vmatpush1.msra.mxu0 %v134
    %162 = vmatprep.subr.mxu0 0.0
    %163 = vmatpush1.msra.mxu0 %v135
    %164 = vmatprep.subr.mxu0 0.0
    %165 = vmatpush1.msra.mxu0 %v136
    %166 = vmatprep.subr.mxu0 0.0
    %167 = vmatpush1.msra.mxu0 0.0
    %168 = vmatprep.subr.mxu0 0.0
    %169 = vmatpush1.msra.mxu0 0.0
    %170 = vmatprep.subr.mxu0 0.0
    %171 = vmatpush1.msra.mxu0 0.0
    %172 = vmatprep.subr.mxu0 0.0
    %173 = vmatpush1.msra.mxu0 0.0
    %174 = vmatprep.subr.mxu0 0.0
    %175 = vmatpush1.msra.mxu0 0.0
    %176 = vmatprep.subr.mxu0 0.0
    %177 = vmatpush1.msra.mxu0 0.0
    %178 = vmatprep.subr.mxu0 0.0
    %179 = vmatpush1.msra.mxu0 0.0
    %180 = vmatprep.subr.mxu0 0.0
    %181 = vmatpush1.msra.mxu0 0.0
    %182 = vmatprep.subr.mxu0 0.0
    %183 = vmatpush1.msra.mxu0 0.0
    %184 = vmatprep.subr.mxu0 0.0
    %185 = vmatpush1.msra.mxu0 0.0
    %186 = vmatprep.subr.mxu0 0.0
    %187 = vmatpush1.msra.mxu0 0.0
    %188 = vmatprep.subr.mxu0 0.0
    %189 = vmatpush1.msra.mxu0 0.0
    %190 = vmatprep.subr.mxu0 0.0
    %191 = vmatpush1.msra.mxu0 0.0
    %192 = vmatprep.subr.mxu0 0.0
    %193 = vmatpush1.msra.mxu0 0.0
    %194 = vmatprep.subr.mxu0 0.0
    %195 = vmatpush1.msra.mxu0 0.0
    %196 = vmatprep.subr.mxu0 0.0
    %197 = vmatpush1.msra.mxu0 0.0
    %198 = vmatprep.subr.mxu0 0.0
    %199 = vmatpush1.msra.mxu0 0.0
    %200 = vmatprep.subr.mxu0 0.0
    %201 = vmatpush1.msra.mxu0 0.0
    %202 = vmatprep.subr.mxu0 0.0
    %203 = vmatpush1.msra.mxu0 0.0
    %204 = vmatprep.subr.mxu0 0.0
    %205 = vmatpush1.msra.mxu0 0.0
    %206 = vmatprep.subr.mxu0 0.0
    %207 = vmatpush1.msra.mxu0 0.0
    %208 = vmatprep.subr.mxu0 0.0
    %209 = vmatpush1.msra.mxu0 0.0
    %210 = vmatprep.subr.mxu0 0.0
    %211 = vmatpush1.msra.mxu0 0.0
    %212 = vmatprep.subr.mxu0 0.0
    %213 = vmatpush1.msra.mxu0 0.0
    %214 = vmatprep.mubr.f32.mxu0 0.0
    %215 = vmatmul.mubr.f32.gmra.mrb[0].mxu0 %v148
    %v216 = vpop.f32.mrb[0].mxu0
    %v217 = vadd.f32 %v142, %v216
    %v218 = vpop.f32.mrb[0].mxu0
    %219 = vdwg.mxu0
    %vm220 = vcmask 254976
    %221 = vst.msk [vmem:[#allocation8] sm:$0x3] %vm220, %v217
    // Predicated region
    $region26: #{content_encoder_head.1} parent=1 // pred_check
      _
    $region27: #{content_encoder_head.1} parent=1 // pred_check_branch
      %223 = sbr.rel (0) target = $region29
    $region28: #{content_encoder_head.1} parent=1 // pred_region
      %s225 = ssub.s32 32, 32
      %226 = vsyncadd [#allocation4], %s225
      %s228 = sshll.u32 [#allocation8], 4
      %s229 = int_to_ptr.vmem [resolvable:$true] %s228
      %231 = dma.vmem_to_hbm [thread:$0]  %s229, 32, %s3, [#allocation4]
    $region29: #{content_encoder_head.1} parent=1 // pred_fallthru
      _
    // Predicated region
    $region30: #{content_encoder_head.1} parent=1 // pred_check
      _
    $region31: #{content_encoder_head.1} parent=1 // pred_check_branch
      %233 = sbr.rel (0) target = $region33
    $region32: #{content_encoder_head.1} parent=1 // pred_region
      %234 = dma.done [#allocation4], 32
    $region33: #{content_encoder_head.1} parent=1 // pred_fallthru
      _
    %235 = vsyncpa [#allocation3], 1
    %236 = vsyncpa [#allocation6], 1
    %237 = vsyncpa [#allocation4], 1

</llo_original>
